<compile_context>
chip_gen: v5e
topology: v5e:2x2
jax: 0.10.0
libtpu: 0.0.40
codegen_flags: <defaults>
</compile_context>

<pallas_src>
import functools
import math

import jax
import jax.numpy as jnp
from jax.experimental import pallas as pl
from jax.experimental.pallas import tpu as pltpu


def _round_up(x, m):
    return (x + m - 1) // m * m


def _choose_block_b(B, block_b):
    if block_b is not None:
        # Tunable; clamp to a lane-aligned size that fits all generations.
        return min(max(128, _round_up(int(block_b), 128)), 16384)
    cap = 8192                       # ~1 MiB slab per step; sweet spot on v5e/v6e/v7x
    if B <= 128:
        return 128
    if B <= 2 * cap:
        # Split into (at least) two blocks so v7x's 2 TensorCores both get work.
        return _round_up((B + 1) // 2, 128)
    return cap


def _mixture_gauss_kernel(slab_ref, out_ref, *, dim, num_coeff, batch, block_b):
    """One batch block of the Gaussian-mixture log-likelihood.

    slab_ref : (rows_pad, block_b) packed rows:
               [0, H*D)            predicted translation, row = h*D + d
               [H*D, 2*H*D)        predicted variance,    row = h*D + d
               [2*H*D, 2*H*D+D)    target (one row per channel)
               [2*H*D+D, ...+H)    mixture coefficients (one row per hypothesis)
    out_ref  : (1, 8, 128) partial sum of per-sample logsumexp for this block.
    """
    HD = num_coeff * dim
    pv_off = HD
    tgt_off = 2 * HD
    coeff_off = 2 * HD + dim
    use_coeff = num_coeff > 1   # torch ignores predicted_coeff when H == 1.

    def row(r):
        return slab_ref[r:r + 1, :]            # (1, block_b) static-slice load

    const = jnp.float32(dim * math.log(2.0 * math.pi))
    tgt = [row(tgt_off + d) for d in range(dim)]

    logs = []
    m_run = None
    for h in range(num_coeff):
        maha = None
        det = None
        for d in range(dim):
            r = h * dim + d
            diff = tgt[d] - row(r)                       # (1, block_b)
            v = row(pv_off + r) + jnp.float32(1e-8)      # (1, block_b)
            q = (diff * diff) / v
            maha = q if maha is None else maha + q
            # NOTE: log of the *product* of variances, matching the torch
            # reference (can underflow for extremely small variances).
            det = v if det is None else det * v
        log_p = jnp.float32(-0.5) * (maha + const + jnp.log(det))
        if use_coeff:
            log_p = log_p + jnp.log(row(coeff_off + h))
        logs.append(log_p)
        m_run = log_p if m_run is None else jnp.maximum(m_run, log_p)

    if use_coeff:
        # logsumexp over hypotheses, unrolled (H is a small static int).
        s_exp = None
        for log_p in logs:
            e = jnp.exp(log_p - m_run)
            s_exp = e if s_exp is None else s_exp + e
        lse = m_run + jnp.log(s_exp)                     # (1, block_b)
    else:
        lse = logs[0]

    # Mask lanes past the real batch, then reduce to one partial sum so the
    # per-block HBM write is a single tile (the cross-lane sum uses the
    # otherwise-idle XLU).
    lane = jax.lax.broadcasted_iota(jnp.int32, (1, block_b), 1)
    valid = (pl.program_id(0) * block_b + lane) < batch
    part = jnp.sum(jnp.where(valid, lse, jnp.float32(0.0)))
    out_ref[...] = jnp.zeros_like(out_ref) + part


def mixture_gauss_loss(predicted_translation, predicted_var, predicted_coeff,
                       target, *, block_b=None):
    """Pallas implementation of mixture_gauss.forward.

    predicted_translation : (B, H*D)
    predicted_var         : (B, H*D)
    predicted_coeff       : (B, H)
    target                : (B, D)
    returns               : shape-(1,) mixture NLL (matches .view([1]))
    """
    pt = jnp.asarray(predicted_translation, jnp.float32)
    pv = jnp.asarray(predicted_var, jnp.float32)
    pc = jnp.asarray(predicted_coeff, jnp.float32)
    tgt = jnp.asarray(target, jnp.float32)

    B, num_coeff = pc.shape
    dim = pv.shape[1] // num_coeff

    rows = 2 * num_coeff * dim + dim + num_coeff
    rows_pad = _round_up(rows, 8)

    block_b = _choose_block_b(B, block_b)
    Bp = _round_up(B, block_b)
    num_blocks = Bp // block_b

    # Single repack pass: concat everything, pad, one transpose to lane-dense.
    # Padded batch lanes get 1.0 everywhere (kept finite; masked in-kernel).
    feat = jnp.concatenate([pt, pv, tgt, pc], axis=1)            # (B, rows)
    feat = jnp.pad(feat, ((0, Bp - B), (0, rows_pad - rows)),
                   constant_values=1.0)
    slab = feat.T                                                # (rows_pad, Bp)

    kernel = functools.partial(_mixture_gauss_kernel, dim=dim,
                               num_coeff=num_coeff, batch=B, block_b=block_b)

    partials = pl.pallas_call(
        kernel,
        out_shape=jax.ShapeDtypeStruct((num_blocks, 8, 128), jnp.float32),
        grid_spec=pltpu.PrefetchScalarGridSpec(
            num_scalar_prefetch=0,
            grid=(num_blocks,),
            in_specs=[pl.BlockSpec((rows_pad, block_b), lambda i: (0, i))],
            out_specs=pl.BlockSpec((1, 8, 128), lambda i: (i, 0, 0)),
        ),
        compiler_params=pltpu.CompilerParams(
            dimension_semantics=("parallel",)),
    )(slab)

    # Final tiny reduction over num_blocks partial sums.
    mixture_loss = -(jnp.sum(partials[:, 0, 0]) / jnp.float32(B))
    return mixture_loss.reshape(1)


def _mixture_gauss_ref(pt, pv, pc, tgt):
    """Pure-JAX reference mirroring the PyTorch module."""
    B, H = pc.shape
    D = pv.shape[1] // H
    ptr = pt.reshape(B, H, D)
    pvr = pv.reshape(B, H, D) + 1e-8
    t = tgt.reshape(B, 1, D)
    maha = jnp.sum((t - ptr) ** 2 / pvr, axis=-1)
    log_p = -0.5 * (maha + D * jnp.log(2.0 * jnp.pi)
                    + jnp.log(jnp.prod(pvr, axis=-1)))
    if H > 1:
        log_pdf = log_p + jnp.log(pc)
        return (-jnp.mean(jax.scipy.special.logsumexp(log_pdf, axis=1))
                ).reshape(1)
    return (-jnp.mean(log_p[:, 0])).reshape(1)


def _make_inputs(key, B, H, D):
    k1, k2, k3, k4 = jax.random.split(key, 4)
    pred_t = jax.random.normal(k1, (B, H * D), jnp.float32)
    pred_var = jax.random.uniform(k2, (B, H * D), jnp.float32,
                                  minval=0.1, maxval=1.0)
    pred_coeff = jax.nn.softmax(jax.random.normal(k3, (B, H), jnp.float32),
                                axis=-1)
    target = jax.random.normal(k4, (B, D), jnp.float32)
    return pred_t, pred_var, pred_coeff, target


if __name__ == "__main__":
    key = jax.random.PRNGKey(0)
    cases = [(16, 4, 3),    # small, single block, H > 1 branch
             (300, 4, 3),   # multi-block grid + padded-lane masking
             (16, 1, 3)]    # H == 1 branch (coeff ignored, as in torch)
    for idx, (B, H, D) in enumerate(cases):
        key, sub = jax.random.split(key)
        pred_t, pred_var, pred_coeff, target = _make_inputs(sub, B, H, D)
        loss = mixture_gauss_loss(pred_t, pred_var, pred_coeff, target)
        jax.block_until_ready(loss)
        ref = _mixture_gauss_ref(pred_t, pred_var, pred_coeff, target)
        if not bool(jnp.allclose(loss, ref, rtol=1e-4, atol=1e-4)):
            raise AssertionError(
                f"case {idx} (B={B},H={H},D={D}): kernel={loss} ref={ref}")
    print("KERNEL_OK")
</pallas_src>

<mosaic_0001>
module attributes {stable_mosaic.version = 11 : i64} {
  func.func @_mixture_gauss_kernel(%arg0: i32, %arg1: memref<32x128xf32, #tpu.memory_space<vmem>>, %arg2: memref<1x8x128xf32, #tpu.memory_space<vmem>>) attributes {dimension_semantics = [#tpu.dimension_semantics<parallel>], iteration_bounds = array<i64: 1>, scalar_prefetch = 0 : i64, scratch_operands = 0 : i64, tpu.core_type = #tpu.core_type<tc>, window_params = [{transform_indices = @transform_0, window_bounds = array<i64: 32, 128>}, {transform_indices = @transform_1, window_bounds = array<i64: 1, 8, 128>}]} {
    %c24 = arith.constant 24 : index
    %c0 = arith.constant 0 : index
    %0 = vector.load %arg1[%c24, %c0] : memref<32x128xf32, #tpu.memory_space<vmem>>, vector<1x128xf32>
    %c25 = arith.constant 25 : index
    %c0_0 = arith.constant 0 : index
    %1 = vector.load %arg1[%c25, %c0_0] : memref<32x128xf32, #tpu.memory_space<vmem>>, vector<1x128xf32>
    %c26 = arith.constant 26 : index
    %c0_1 = arith.constant 0 : index
    %2 = vector.load %arg1[%c26, %c0_1] : memref<32x128xf32, #tpu.memory_space<vmem>>, vector<1x128xf32>
    %c0_2 = arith.constant 0 : index
    %c0_3 = arith.constant 0 : index
    %3 = vector.load %arg1[%c0_2, %c0_3] : memref<32x128xf32, #tpu.memory_space<vmem>>, vector<1x128xf32>
    %4 = arith.subf %0, %3 : vector<1x128xf32>
    %c12 = arith.constant 12 : index
    %c0_4 = arith.constant 0 : index
    %5 = vector.load %arg1[%c12, %c0_4] : memref<32x128xf32, #tpu.memory_space<vmem>>, vector<1x128xf32>
    %cst = arith.constant 9.99999993E-9 : f32
    %6 = vector.broadcast %cst : f32 to vector<1x128xf32>
    %7 = arith.addf %5, %6 : vector<1x128xf32>
    %8 = arith.mulf %4, %4 : vector<1x128xf32>
    %9 = arith.divf %8, %7 : vector<1x128xf32>
    %c1 = arith.constant 1 : index
    %c0_5 = arith.constant 0 : index
    %10 = vector.load %arg1[%c1, %c0_5] : memref<32x128xf32, #tpu.memory_space<vmem>>, vector<1x128xf32>
    %11 = arith.subf %1, %10 : vector<1x128xf32>
    %c13 = arith.constant 13 : index
    %c0_6 = arith.constant 0 : index
    %12 = vector.load %arg1[%c13, %c0_6] : memref<32x128xf32, #tpu.memory_space<vmem>>, vector<1x128xf32>
    %cst_7 = arith.constant 9.99999993E-9 : f32
    %13 = vector.broadcast %cst_7 : f32 to vector<1x128xf32>
    %14 = arith.addf %12, %13 : vector<1x128xf32>
    %15 = arith.mulf %11, %11 : vector<1x128xf32>
    %16 = arith.divf %15, %14 : vector<1x128xf32>
    %17 = arith.addf %9, %16 : vector<1x128xf32>
    %18 = arith.mulf %7, %14 : vector<1x128xf32>
    %c2 = arith.constant 2 : index
    %c0_8 = arith.constant 0 : index
    %19 = vector.load %arg1[%c2, %c0_8] : memref<32x128xf32, #tpu.memory_space<vmem>>, vector<1x128xf32>
    %20 = arith.subf %2, %19 : vector<1x128xf32>
    %c14 = arith.constant 14 : index
    %c0_9 = arith.constant 0 : index
    %21 = vector.load %arg1[%c14, %c0_9] : memref<32x128xf32, #tpu.memory_space<vmem>>, vector<1x128xf32>
    %cst_10 = arith.constant 9.99999993E-9 : f32
    %22 = vector.broadcast %cst_10 : f32 to vector<1x128xf32>
    %23 = arith.addf %21, %22 : vector<1x128xf32>
    %24 = arith.mulf %20, %20 : vector<1x128xf32>
    %25 = arith.divf %24, %23 : vector<1x128xf32>
    %26 = arith.addf %17, %25 : vector<1x128xf32>
    %27 = arith.mulf %18, %23 : vector<1x128xf32>
    %cst_11 = arith.constant 5.51363134 : f32
    %28 = vector.broadcast %cst_11 : f32 to vector<1x128xf32>
    %29 = arith.addf %26, %28 : vector<1x128xf32>
    %30 = math.log %27 : vector<1x128xf32>
    %31 = arith.addf %29, %30 : vector<1x128xf32>
    %cst_12 = arith.constant -5.000000e-01 : f32
    %32 = vector.broadcast %cst_12 : f32 to vector<1x128xf32>
    %33 = arith.mulf %32, %31 : vector<1x128xf32>
    %c27 = arith.constant 27 : index
    %c0_13 = arith.constant 0 : index
    %34 = vector.load %arg1[%c27, %c0_13] : memref<32x128xf32, #tpu.memory_space<vmem>>, vector<1x128xf32>
    %35 = math.log %34 : vector<1x128xf32>
    %36 = arith.addf %33, %35 : vector<1x128xf32>
    %c3 = arith.constant 3 : index
    %c0_14 = arith.constant 0 : index
    %37 = vector.load %arg1[%c3, %c0_14] : memref<32x128xf32, #tpu.memory_space<vmem>>, vector<1x128xf32>
    %38 = arith.subf %0, %37 : vector<1x128xf32>
    %c15 = arith.constant 15 : index
    %c0_15 = arith.constant 0 : index
    %39 = vector.load %arg1[%c15, %c0_15] : memref<32x128xf32, #tpu.memory_space<vmem>>, vector<1x128xf32>
    %cst_16 = arith.constant 9.99999993E-9 : f32
    %40 = vector.broadcast %cst_16 : f32 to vector<1x128xf32>
    %41 = arith.addf %39, %40 : vector<1x128xf32>
    %42 = arith.mulf %38, %38 : vector<1x128xf32>
    %43 = arith.divf %42, %41 : vector<1x128xf32>
    %c4 = arith.constant 4 : index
    %c0_17 = arith.constant 0 : index
    %44 = vector.load %arg1[%c4, %c0_17] : memref<32x128xf32, #tpu.memory_space<vmem>>, vector<1x128xf32>
    %45 = arith.subf %1, %44 : vector<1x128xf32>
    %c16 = arith.constant 16 : index
    %c0_18 = arith.constant 0 : index
    %46 = vector.load %arg1[%c16, %c0_18] : memref<32x128xf32, #tpu.memory_space<vmem>>, vector<1x128xf32>
    %cst_19 = arith.constant 9.99999993E-9 : f32
    %47 = vector.broadcast %cst_19 : f32 to vector<1x128xf32>
    %48 = arith.addf %46, %47 : vector<1x128xf32>
    %49 = arith.mulf %45, %45 : vector<1x128xf32>
    %50 = arith.divf %49, %48 : vector<1x128xf32>
    %51 = arith.addf %43, %50 : vector<1x128xf32>
    %52 = arith.mulf %41, %48 : vector<1x128xf32>
    %c5 = arith.constant 5 : index
    %c0_20 = arith.constant 0 : index
    %53 = vector.load %arg1[%c5, %c0_20] : memref<32x128xf32, #tpu.memory_space<vmem>>, vector<1x128xf32>
    %54 = arith.subf %2, %53 : vector<1x128xf32>
    %c17 = arith.constant 17 : index
    %c0_21 = arith.constant 0 : index
    %55 = vector.load %arg1[%c17, %c0_21] : memref<32x128xf32, #tpu.memory_space<vmem>>, vector<1x128xf32>
    %cst_22 = arith.constant 9.99999993E-9 : f32
    %56 = vector.broadcast %cst_22 : f32 to vector<1x128xf32>
    %57 = arith.addf %55, %56 : vector<1x128xf32>
    %58 = arith.mulf %54, %54 : vector<1x128xf32>
    %59 = arith.divf %58, %57 : vector<1x128xf32>
    %60 = arith.addf %51, %59 : vector<1x128xf32>
    %61 = arith.mulf %52, %57 : vector<1x128xf32>
    %cst_23 = arith.constant 5.51363134 : f32
    %62 = vector.broadcast %cst_23 : f32 to vector<1x128xf32>
    %63 = arith.addf %60, %62 : vector<1x128xf32>
    %64 = math.log %61 : vector<1x128xf32>
    %65 = arith.addf %63, %64 : vector<1x128xf32>
    %cst_24 = arith.constant -5.000000e-01 : f32
    %66 = vector.broadcast %cst_24 : f32 to vector<1x128xf32>
    %67 = arith.mulf %66, %65 : vector<1x128xf32>
    %c28 = arith.constant 28 : index
    %c0_25 = arith.constant 0 : index
    %68 = vector.load %arg1[%c28, %c0_25] : memref<32x128xf32, #tpu.memory_space<vmem>>, vector<1x128xf32>
    %69 = math.log %68 : vector<1x128xf32>
    %70 = arith.addf %67, %69 : vector<1x128xf32>
    %71 = arith.maximumf %36, %70 : vector<1x128xf32>
    %c6 = arith.constant 6 : index
    %c0_26 = arith.constant 0 : index
    %72 = vector.load %arg1[%c6, %c0_26] : memref<32x128xf32, #tpu.memory_space<vmem>>, vector<1x128xf32>
    %73 = arith.subf %0, %72 : vector<1x128xf32>
    %c18 = arith.constant 18 : index
    %c0_27 = arith.constant 0 : index
    %74 = vector.load %arg1[%c18, %c0_27] : memref<32x128xf32, #tpu.memory_space<vmem>>, vector<1x128xf32>
    %cst_28 = arith.constant 9.99999993E-9 : f32
    %75 = vector.broadcast %cst_28 : f32 to vector<1x128xf32>
    %76 = arith.addf %74, %75 : vector<1x128xf32>
    %77 = arith.mulf %73, %73 : vector<1x128xf32>
    %78 = arith.divf %77, %76 : vector<1x128xf32>
    %c7 = arith.constant 7 : index
    %c0_29 = arith.constant 0 : index
    %79 = vector.load %arg1[%c7, %c0_29] : memref<32x128xf32, #tpu.memory_space<vmem>>, vector<1x128xf32>
    %80 = arith.subf %1, %79 : vector<1x128xf32>
    %c19 = arith.constant 19 : index
    %c0_30 = arith.constant 0 : index
    %81 = vector.load %arg1[%c19, %c0_30] : memref<32x128xf32, #tpu.memory_space<vmem>>, vector<1x128xf32>
    %cst_31 = arith.constant 9.99999993E-9 : f32
    %82 = vector.broadcast %cst_31 : f32 to vector<1x128xf32>
    %83 = arith.addf %81, %82 : vector<1x128xf32>
    %84 = arith.mulf %80, %80 : vector<1x128xf32>
    %85 = arith.divf %84, %83 : vector<1x128xf32>
    %86 = arith.addf %78, %85 : vector<1x128xf32>
    %87 = arith.mulf %76, %83 : vector<1x128xf32>
    %c8 = arith.constant 8 : index
    %c0_32 = arith.constant 0 : index
    %88 = vector.load %arg1[%c8, %c0_32] : memref<32x128xf32, #tpu.memory_space<vmem>>, vector<1x128xf32>
    %89 = arith.subf %2, %88 : vector<1x128xf32>
    %c20 = arith.constant 20 : index
    %c0_33 = arith.constant 0 : index
    %90 = vector.load %arg1[%c20, %c0_33] : memref<32x128xf32, #tpu.memory_space<vmem>>, vector<1x128xf32>
    %cst_34 = arith.constant 9.99999993E-9 : f32
    %91 = vector.broadcast %cst_34 : f32 to vector<1x128xf32>
    %92 = arith.addf %90, %91 : vector<1x128xf32>
    %93 = arith.mulf %89, %89 : vector<1x128xf32>
    %94 = arith.divf %93, %92 : vector<1x128xf32>
    %95 = arith.addf %86, %94 : vector<1x128xf32>
    %96 = arith.mulf %87, %92 : vector<1x128xf32>
    %cst_35 = arith.constant 5.51363134 : f32
    %97 = vector.broadcast %cst_35 : f32 to vector<1x128xf32>
    %98 = arith.addf %95, %97 : vector<1x128xf32>
    %99 = math.log %96 : vector<1x128xf32>
    %100 = arith.addf %98, %99 : vector<1x128xf32>
    %cst_36 = arith.constant -5.000000e-01 : f32
    %101 = vector.broadcast %cst_36 : f32 to vector<1x128xf32>
    %102 = arith.mulf %101, %100 : vector<1x128xf32>
    %c29 = arith.constant 29 : index
    %c0_37 = arith.constant 0 : index
    %103 = vector.load %arg1[%c29, %c0_37] : memref<32x128xf32, #tpu.memory_space<vmem>>, vector<1x128xf32>
    %104 = math.log %103 : vector<1x128xf32>
    %105 = arith.addf %102, %104 : vector<1x128xf32>
    %106 = arith.maximumf %71, %105 : vector<1x128xf32>
    %c9 = arith.constant 9 : index
    %c0_38 = arith.constant 0 : index
    %107 = vector.load %arg1[%c9, %c0_38] : memref<32x128xf32, #tpu.memory_space<vmem>>, vector<1x128xf32>
    %108 = arith.subf %0, %107 : vector<1x128xf32>
    %c21 = arith.constant 21 : index
    %c0_39 = arith.constant 0 : index
    %109 = vector.load %arg1[%c21, %c0_39] : memref<32x128xf32, #tpu.memory_space<vmem>>, vector<1x128xf32>
    %cst_40 = arith.constant 9.99999993E-9 : f32
    %110 = vector.broadcast %cst_40 : f32 to vector<1x128xf32>
    %111 = arith.addf %109, %110 : vector<1x128xf32>
    %112 = arith.mulf %108, %108 : vector<1x128xf32>
    %113 = arith.divf %112, %111 : vector<1x128xf32>
    %c10 = arith.constant 10 : index
    %c0_41 = arith.constant 0 : index
    %114 = vector.load %arg1[%c10, %c0_41] : memref<32x128xf32, #tpu.memory_space<vmem>>, vector<1x128xf32>
    %115 = arith.subf %1, %114 : vector<1x128xf32>
    %c22 = arith.constant 22 : index
    %c0_42 = arith.constant 0 : index
    %116 = vector.load %arg1[%c22, %c0_42] : memref<32x128xf32, #tpu.memory_space<vmem>>, vector<1x128xf32>
    %cst_43 = arith.constant 9.99999993E-9 : f32
    %117 = vector.broadcast %cst_43 : f32 to vector<1x128xf32>
    %118 = arith.addf %116, %117 : vector<1x128xf32>
    %119 = arith.mulf %115, %115 : vector<1x128xf32>
    %120 = arith.divf %119, %118 : vector<1x128xf32>
    %121 = arith.addf %113, %120 : vector<1x128xf32>
    %122 = arith.mulf %111, %118 : vector<1x128xf32>
    %c11 = arith.constant 11 : index
    %c0_44 = arith.constant 0 : index
    %123 = vector.load %arg1[%c11, %c0_44] : memref<32x128xf32, #tpu.memory_space<vmem>>, vector<1x128xf32>
    %124 = arith.subf %2, %123 : vector<1x128xf32>
    %c23 = arith.constant 23 : index
    %c0_45 = arith.constant 0 : index
    %125 = vector.load %arg1[%c23, %c0_45] : memref<32x128xf32, #tpu.memory_space<vmem>>, vector<1x128xf32>
    %cst_46 = arith.constant 9.99999993E-9 : f32
    %126 = vector.broadcast %cst_46 : f32 to vector<1x128xf32>
    %127 = arith.addf %125, %126 : vector<1x128xf32>
    %128 = arith.mulf %124, %124 : vector<1x128xf32>
    %129 = arith.divf %128, %127 : vector<1x128xf32>
    %130 = arith.addf %121, %129 : vector<1x128xf32>
    %131 = arith.mulf %122, %127 : vector<1x128xf32>
    %cst_47 = arith.constant 5.51363134 : f32
    %132 = vector.broadcast %cst_47 : f32 to vector<1x128xf32>
    %133 = arith.addf %130, %132 : vector<1x128xf32>
    %134 = math.log %131 : vector<1x128xf32>
    %135 = arith.addf %133, %134 : vector<1x128xf32>
    %cst_48 = arith.constant -5.000000e-01 : f32
    %136 = vector.broadcast %cst_48 : f32 to vector<1x128xf32>
    %137 = arith.mulf %136, %135 : vector<1x128xf32>
    %c30 = arith.constant 30 : index
    %c0_49 = arith.constant 0 : index
    %138 = vector.load %arg1[%c30, %c0_49] : memref<32x128xf32, #tpu.memory_space<vmem>>, vector<1x128xf32>
    %139 = math.log %138 : vector<1x128xf32>
    %140 = arith.addf %137, %139 : vector<1x128xf32>
    %141 = arith.maximumf %106, %140 : vector<1x128xf32>
    %142 = arith.subf %36, %141 : vector<1x128xf32>
    %143 = math.exp %142 : vector<1x128xf32>
    %144 = arith.subf %70, %141 : vector<1x128xf32>
    %145 = math.exp %144 : vector<1x128xf32>
    %146 = arith.addf %143, %145 : vector<1x128xf32>
    %147 = arith.subf %105, %141 : vector<1x128xf32>
    %148 = math.exp %147 : vector<1x128xf32>
    %149 = arith.addf %146, %148 : vector<1x128xf32>
    %150 = arith.subf %140, %141 : vector<1x128xf32>
    %151 = math.exp %150 : vector<1x128xf32>
    %152 = arith.addf %149, %151 : vector<1x128xf32>
    %153 = math.log %152 : vector<1x128xf32>
    %154 = arith.addf %141, %153 : vector<1x128xf32>
    %155 = tpu.iota {dimensions = array<i32: 1>} : vector<1x128xi32>
    %c128_i32 = arith.constant 128 : i32
    %156 = arith.muli %arg0, %c128_i32 : i32
    %157 = vector.broadcast %156 : i32 to vector<1x128xi32>
    %158 = arith.addi %157, %155 : vector<1x128xi32>
    %c16_i32 = arith.constant 16 : i32
    %159 = vector.broadcast %c16_i32 : i32 to vector<1x128xi32>
    %160 = arith.cmpi slt, %158, %159 : vector<1x128xi32>
    %cst_50 = arith.constant 0.000000e+00 : f32
    %161 = vector.broadcast %cst_50 : f32 to vector<1x128xf32>
    %162 = arith.select %160, %154, %161 : vector<1x128xi1>, vector<1x128xf32>
    %163 = vector.shape_cast %162 : vector<1x128xf32> to vector<1x1x128xf32>
    %cst_51 = arith.constant dense<0.000000e+00> : vector<1xf32>
    %164 = vector.multi_reduction <add>, %163, %cst_51 [1, 2] : vector<1x1x128xf32> to vector<1xf32>
    %165 = vector.shape_cast %164 : vector<1xf32> to vector<1x1x1xf32>
    %166 = vector.extract %165[0, 0, 0] : f32 from vector<1x1x1xf32>
    %cst_52 = arith.constant 0.000000e+00 : f32
    %167 = vector.broadcast %cst_52 : f32 to vector<1x8x128xf32>
    %168 = vector.broadcast %166 : f32 to vector<1x8x128xf32>
    %169 = arith.addf %167, %168 : vector<1x8x128xf32>
    %c0_53 = arith.constant 0 : index
    %c0_54 = arith.constant 0 : index
    %c0_55 = arith.constant 0 : index
    %170 = vector.load %arg2[%c0_53, %c0_54, %c0_55] : memref<1x8x128xf32, #tpu.memory_space<vmem>>, vector<1x8x128xf32>
    tpu.vector_store %arg2[%c0_53, %c0_54, %c0_55], %169 {strides = array<i32>} : memref<1x8x128xf32, #tpu.memory_space<vmem>>, vector<1x8x128xf32>,
    return
  }
  func.func @transform_0(%arg0: i32) -> (i32, i32) {
    %c0_i32 = arith.constant 0 : i32
    %c0_i32_0 = arith.constant 0 : i32
    return %c0_i32, %arg0 : i32, i32
  }
  func.func @transform_1(%arg0: i32) -> (i32, i32, i32) {
    %c0_i32 = arith.constant 0 : i32
    %c0_i32_0 = arith.constant 0 : i32
    %c0_i32_1 = arith.constant 0 : i32
    return %arg0, %c0_i32, %c0_i32_0 : i32, i32, i32
  }
}

</mosaic_0001>

<llo_original>
// kernel: tpu_custom_call.1
$region0: #{tpu_custom_call.1}
  #allocation0 [shape = 'u32[]', space=smem, size = 0x4, offset = 0x4, fixed_abs, tag = 'smem constant byte address 0x4 - core index']
  #allocation1 [shape = 'u32[72,128]{1,0:T(1,128)}', space=vmem, size = 0x9000, scoped, tag = 'internal scratch']
  %s0 = inlined_call_operand.hbm [shape: f32[32,128], index: 0, kind: input, shape index: {}]
  %s1 = inlined_call_operand.hbm [shape: f32[1,8,128], index: 1, kind: output, shape index: {}]
  %s2 = sld [smem:[#allocation0]]
  $region18: #{tpu_custom_call.1} parent=0
    _
  %s4 = ssub.s32 1, %s2
  %s5 = scalar_select 0, %s4, %s2
  $region1: #{tpu_custom_call.1} parent=0
    #allocation2 [shape = 'u8[16384]{0}', space=vmem, size = 0x4000, scoped, tag = 'input window, operand 0, single buffered']
    #allocation3 [shape = 's32[1]{0}', space=sflag, size = 0x4, scoped, tag = 'scoped memory for tpu_custom_call.1']
    #allocation4 [shape = 's32[1]{0}', space=sflag, size = 0x4, scoped, tag = 'scoped memory for tpu_custom_call.1']
    #allocation5 [shape = 'u8[4096]{0}', space=vmem, size = 0x1000, scoped, tag = 'output window, operand 0, single buffered']
    %6 = vsyncpa [#allocation3], 0
    %7 = vsyncpa [#allocation4], 0
    // Predicated region
    $region2: #{tpu_custom_call.1} parent=1 // pred_check
      _
    $region3: #{tpu_custom_call.1} parent=1 // pred_check_branch
      %9 = sbr.rel (0) target = $region5
    $region4: #{tpu_custom_call.1} parent=1 // pred_region
      %11 = vsyncadd [#allocation3], 0
      %s12 = sshll.u32 %s0, 4
      %s13 = int_to_ptr.hbm [resolvable:$true] %s12
      %s14 = sshll.u32 [#allocation2], 4
      %s15 = int_to_ptr.vmem [resolvable:$true] %s14
      %20 = dma.hbm_to_vmem [thread:$0]  %s13, 512, %s15, [#allocation3], 128, 128, 8
    $region5: #{tpu_custom_call.1} parent=1 // pred_fallthru
      _
    // Predicated region
    $region6: #{tpu_custom_call.1} parent=1 // pred_check
      _
    $region7: #{tpu_custom_call.1} parent=1 // pred_check_branch
      %22 = sbr.rel (0) target = $region9
    $region8: #{tpu_custom_call.1} parent=1 // pred_region
      %24 = dma.done [#allocation3], 512
    $region9: #{tpu_custom_call.1} parent=1 // pred_fallthru
      _
    %v25 = vld [vmem:[#allocation2 + $0x18] sm:$0x1]
    %v26 = vld [vmem:[#allocation2 + $0x19] sm:$0x1]
    %v27 = vld [vmem:[#allocation2 + $0x1a] sm:$0x1]
    %v28 = vld [vmem:[#allocation2] sm:$0x1]
    %v29 = vsub.f32 %v25, %v28
    %v30 = vld [vmem:[#allocation2 + $0xc] sm:$0x1]
    %v31 = vadd.f32 %v30, 1e-08
    %v32 = vmul.f32 %v29, %v29
    %v33 = vrcp.pop %v31
    %v34 = vmul.f32 %v31, %v33
    %v35 = vsub.f32 1.0, %v34
    %v36 = vmul.f32 %v33, %v35
    %v37 = vadd.f32 %v33, %v36
    %vm38 = vweird.f32 %v31
    %vm39 = vweird.f32 %v33
    %vm40 = vmor %vm38, %vm39
    %v41 = vsel %vm40, %v33, %v37
    %v42 = vand.u32 2147483647, %v31
    %vm43 = vcmp.eq.f32.partialorder %v42, 8.507059e+37
    %v44 = vand.u32 %v31, 2147483648
    %v45 = vor.u32 1.1754944e-38, %v44
    %v46 = vsel %vm43, %v45, %v41
    %v47 = vmul.f32 %v32, %v46
    %v48 = vld [vmem:[#allocation2 + $0x1] sm:$0x1]
    %v49 = vsub.f32 %v26, %v48
    %v50 = vld [vmem:[#allocation2 + $0xd] sm:$0x1]
    %v51 = vadd.f32 %v50, 1e-08
    %v52 = vmul.f32 %v49, %v49
    %v53 = vrcp.pop %v51
    %v54 = vmul.f32 %v51, %v53
    %v55 = vsub.f32 1.0, %v54
    %v56 = vmul.f32 %v53, %v55
    %v57 = vadd.f32 %v53, %v56
    %vm58 = vweird.f32 %v51
    %vm59 = vweird.f32 %v53
    %vm60 = vmor %vm58, %vm59
    %v61 = vsel %vm60, %v53, %v57
    %v62 = vand.u32 2147483647, %v51
    %vm63 = vcmp.eq.f32.partialorder %v62, 8.507059e+37
    %v64 = vand.u32 %v51, 2147483648
    %v65 = vor.u32 1.1754944e-38, %v64
    %v66 = vsel %vm63, %v65, %v61
    %v67 = vmul.f32 %v52, %v66
    %v68 = vadd.f32 %v47, %v67
    %v69 = vmul.f32 %v31, %v51
    %v70 = vld [vmem:[#allocation2 + $0x2] sm:$0x1]
    %v71 = vsub.f32 %v27, %v70
    %v72 = vld [vmem:[#allocation2 + $0xe] sm:$0x1]
    %v73 = vadd.f32 %v72, 1e-08
    %v74 = vmul.f32 %v71, %v71
    %v75 = vrcp.pop %v73
    %v76 = vmul.f32 %v73, %v75
    %v77 = vsub.f32 1.0, %v76
    %v78 = vmul.f32 %v75, %v77
    %v79 = vadd.f32 %v75, %v78
    %vm80 = vweird.f32 %v73
    %vm81 = vweird.f32 %v75
    %vm82 = vmor %vm80, %vm81
    %v83 = vsel %vm82, %v75, %v79
    %v84 = vand.u32 2147483647, %v73
    %vm85 = vcmp.eq.f32.partialorder %v84, 8.507059e+37
    %v86 = vand.u32 %v73, 2147483648
    %v87 = vor.u32 1.1754944e-38, %v86
    %v88 = vsel %vm85, %v87, %v83
    %v89 = vmul.f32 %v74, %v88
    %v90 = vadd.f32 %v68, %v89
    %v91 = vmul.f32 %v69, %v73
    %v92 = vadd.f32 %v90, 5.5136313
    %v93 = vlog2.pop %v91
    %v94 = vmul.f32 %v93, 0.6931472
    %v95 = vadd.f32 %v92, %v94
    %v96 = vmul.f32 %v95, -0.5
    %v97 = vld [vmem:[#allocation2 + $0x1b] sm:$0x1]
    %v98 = vlog2.pop %v97
    %v99 = vmul.f32 %v98, 0.6931472
    %v100 = vadd.f32 %v96, %v99
    %v101 = vld [vmem:[#allocation2 + $0x3] sm:$0x1]
    %v102 = vsub.f32 %v25, %v101
    %v103 = vld [vmem:[#allocation2 + $0xf] sm:$0x1]
    %v104 = vadd.f32 %v103, 1e-08
    %v105 = vmul.f32 %v102, %v102
    %v106 = vrcp.pop %v104
    %v107 = vmul.f32 %v104, %v106
    %v108 = vsub.f32 1.0, %v107
    %v109 = vmul.f32 %v106, %v108
    %v110 = vadd.f32 %v106, %v109
    %vm111 = vweird.f32 %v104
    %vm112 = vweird.f32 %v106
    %vm113 = vmor %vm111, %vm112
    %v114 = vsel %vm113, %v106, %v110
    %v115 = vand.u32 2147483647, %v104
    %vm116 = vcmp.eq.f32.partialorder %v115, 8.507059e+37
    %v117 = vand.u32 %v104, 2147483648
    %v118 = vor.u32 1.1754944e-38, %v117
    %v119 = vsel %vm116, %v118, %v114
    %v120 = vmul.f32 %v105, %v119
    %v121 = vld [vmem:[#allocation2 + $0x4] sm:$0x1]
    %v122 = vsub.f32 %v26, %v121
    %v123 = vld [vmem:[#allocation2 + $0x10] sm:$0x1]
    %v124 = vadd.f32 %v123, 1e-08
    %v125 = vmul.f32 %v122, %v122
    %v126 = vrcp.pop %v124
    %v127 = vmul.f32 %v124, %v126
    %v128 = vsub.f32 1.0, %v127
    %v129 = vmul.f32 %v126, %v128
    %v130 = vadd.f32 %v126, %v129
    %vm131 = vweird.f32 %v124
    %vm132 = vweird.f32 %v126
    %vm133 = vmor %vm131, %vm132
    %v134 = vsel %vm133, %v126, %v130
    %v135 = vand.u32 2147483647, %v124
    %vm136 = vcmp.eq.f32.partialorder %v135, 8.507059e+37
    %v137 = vand.u32 %v124, 2147483648
    %v138 = vor.u32 1.1754944e-38, %v137
    %v139 = vsel %vm136, %v138, %v134
    %v140 = vmul.f32 %v125, %v139
    %v141 = vadd.f32 %v120, %v140
    %v142 = vmul.f32 %v104, %v124
    %v143 = vld [vmem:[#allocation2 + $0x5] sm:$0x1]
    %v144 = vsub.f32 %v27, %v143
    %v145 = vld [vmem:[#allocation2 + $0x11] sm:$0x1]
    %v146 = vadd.f32 %v145, 1e-08
    %v147 = vmul.f32 %v144, %v144
    %v148 = vrcp.pop %v146
    %v149 = vmul.f32 %v146, %v148
    %v150 = vsub.f32 1.0, %v149
    %v151 = vmul.f32 %v148, %v150
    %v152 = vadd.f32 %v148, %v151
    %vm153 = vweird.f32 %v146
    %vm154 = vweird.f32 %v148
    %vm155 = vmor %vm153, %vm154
    %v156 = vsel %vm155, %v148, %v152
    %v157 = vand.u32 2147483647, %v146
    %vm158 = vcmp.eq.f32.partialorder %v157, 8.507059e+37
    %v159 = vand.u32 %v146, 2147483648
    %v160 = vor.u32 1.1754944e-38, %v159
    %v161 = vsel %vm158, %v160, %v156
    %v162 = vmul.f32 %v147, %v161
    %v163 = vadd.f32 %v141, %v162
    %v164 = vmul.f32 %v142, %v146
    %v165 = vadd.f32 %v163, 5.5136313
    %v166 = vlog2.pop %v164
    %v167 = vmul.f32 %v166, 0.6931472
    %v168 = vadd.f32 %v165, %v167
    %v169 = vmul.f32 %v168, -0.5
    %v170 = vld [vmem:[#allocation2 + $0x1c] sm:$0x1]
    %v171 = vlog2.pop %v170
    %v172 = vmul.f32 %v171, 0.6931472
    %v173 = vadd.f32 %v169, %v172
    %v174 = vmax.f32 %v100, %v173
    %v175 = vld [vmem:[#allocation2 + $0x6] sm:$0x1]
    %v176 = vsub.f32 %v25, %v175
    %v177 = vld [vmem:[#allocation2 + $0x12] sm:$0x1]
    %v178 = vadd.f32 %v177, 1e-08
    %v179 = vmul.f32 %v176, %v176
    %v180 = vrcp.pop %v178
    %v181 = vmul.f32 %v178, %v180
    %v182 = vsub.f32 1.0, %v181
    %v183 = vmul.f32 %v180, %v182
    %v184 = vadd.f32 %v180, %v183
    %vm185 = vweird.f32 %v178
    %vm186 = vweird.f32 %v180
    %vm187 = vmor %vm185, %vm186
    %v188 = vsel %vm187, %v180, %v184
    %v189 = vand.u32 2147483647, %v178
    %vm190 = vcmp.eq.f32.partialorder %v189, 8.507059e+37
    %v191 = vand.u32 %v178, 2147483648
    %v192 = vor.u32 1.1754944e-38, %v191
    %v193 = vsel %vm190, %v192, %v188
    %v194 = vmul.f32 %v179, %v193
    %v195 = vld [vmem:[#allocation2 + $0x7] sm:$0x1]
    %v196 = vsub.f32 %v26, %v195
    %v197 = vld [vmem:[#allocation2 + $0x13] sm:$0x1]
    %v198 = vadd.f32 %v197, 1e-08
    %v199 = vmul.f32 %v196, %v196
    %v200 = vrcp.pop %v198
    %v201 = vmul.f32 %v198, %v200
    %v202 = vsub.f32 1.0, %v201
    %v203 = vmul.f32 %v200, %v202
    %v204 = vadd.f32 %v200, %v203
    %vm205 = vweird.f32 %v198
    %vm206 = vweird.f32 %v200
    %vm207 = vmor %vm205, %vm206
    %v208 = vsel %vm207, %v200, %v204
    %v209 = vand.u32 2147483647, %v198
    %vm210 = vcmp.eq.f32.partialorder %v209, 8.507059e+37
    %v211 = vand.u32 %v198, 2147483648
    %v212 = vor.u32 1.1754944e-38, %v211
    %v213 = vsel %vm210, %v212, %v208
    %v214 = vmul.f32 %v199, %v213
    %v215 = vadd.f32 %v194, %v214
    %v216 = vmul.f32 %v178, %v198
    %v217 = vld [vmem:[#allocation2 + $0x8] sm:$0x1]
    %v218 = vsub.f32 %v27, %v217
    %v219 = vld [vmem:[#allocation2 + $0x14] sm:$0x1]
    %v220 = vadd.f32 %v219, 1e-08
    %v221 = vmul.f32 %v218, %v218
    %v222 = vrcp.pop %v220
    %v223 = vmul.f32 %v220, %v222
    %v224 = vsub.f32 1.0, %v223
    %v225 = vmul.f32 %v222, %v224
    %v226 = vadd.f32 %v222, %v225
    %vm227 = vweird.f32 %v220
    %vm228 = vweird.f32 %v222
    %vm229 = vmor %vm227, %vm228
    %v230 = vsel %vm229, %v222, %v226
    %v231 = vand.u32 2147483647, %v220
    %vm232 = vcmp.eq.f32.partialorder %v231, 8.507059e+37
    %v233 = vand.u32 %v220, 2147483648
    %v234 = vor.u32 1.1754944e-38, %v233
    %v235 = vsel %vm232, %v234, %v230
    %v236 = vmul.f32 %v221, %v235
    %v237 = vadd.f32 %v215, %v236
    %v238 = vmul.f32 %v216, %v220
    %v239 = vadd.f32 %v237, 5.5136313
    %v240 = vlog2.pop %v238
    %v241 = vmul.f32 %v240, 0.6931472
    %v242 = vadd.f32 %v239, %v241
    %v243 = vmul.f32 %v242, -0.5
    %v244 = vld [vmem:[#allocation2 + $0x1d] sm:$0x1]
    %v245 = vlog2.pop %v244
    %v246 = vmul.f32 %v245, 0.6931472
    %v247 = vadd.f32 %v243, %v246
    %v248 = vmax.f32 %v174, %v247
    %v249 = vld [vmem:[#allocation2 + $0x9] sm:$0x1]
    %v250 = vsub.f32 %v25, %v249
    %v251 = vld [vmem:[#allocation2 + $0x15] sm:$0x1]
    %v252 = vadd.f32 %v251, 1e-08
    %v253 = vmul.f32 %v250, %v250
    %v254 = vrcp.pop %v252
    %v255 = vmul.f32 %v252, %v254
    %v256 = vsub.f32 1.0, %v255
    %v257 = vmul.f32 %v254, %v256
    %v258 = vadd.f32 %v254, %v257
    %vm259 = vweird.f32 %v252
    %vm260 = vweird.f32 %v254
    %vm261 = vmor %vm259, %vm260
    %v262 = vsel %vm261, %v254, %v258
    %v263 = vand.u32 2147483647, %v252
    %vm264 = vcmp.eq.f32.partialorder %v263, 8.507059e+37
    %v265 = vand.u32 %v252, 2147483648
    %v266 = vor.u32 1.1754944e-38, %v265
    %v267 = vsel %vm264, %v266, %v262
    %v268 = vmul.f32 %v253, %v267
    %v269 = vld [vmem:[#allocation2 + $0xa] sm:$0x1]
    %v270 = vsub.f32 %v26, %v269
    %v271 = vld [vmem:[#allocation2 + $0x16] sm:$0x1]
    %v272 = vadd.f32 %v271, 1e-08
    %v273 = vmul.f32 %v270, %v270
    %v274 = vrcp.pop %v272
    %v275 = vmul.f32 %v272, %v274
    %v276 = vsub.f32 1.0, %v275
    %v277 = vmul.f32 %v274, %v276
    %v278 = vadd.f32 %v274, %v277
    %vm279 = vweird.f32 %v272
    %vm280 = vweird.f32 %v274
    %vm281 = vmor %vm279, %vm280
    %v282 = vsel %vm281, %v274, %v278
    %v283 = vand.u32 2147483647, %v272
    %vm284 = vcmp.eq.f32.partialorder %v283, 8.507059e+37
    %v285 = vand.u32 %v272, 2147483648
    %v286 = vor.u32 1.1754944e-38, %v285
    %v287 = vsel %vm284, %v286, %v282
    %v288 = vmul.f32 %v273, %v287
    %v289 = vadd.f32 %v268, %v288
    %v290 = vmul.f32 %v252, %v272
    %v291 = vld [vmem:[#allocation2 + $0xb] sm:$0x1]
    %v292 = vsub.f32 %v27, %v291
    %v293 = vld [vmem:[#allocation2 + $0x17] sm:$0x1]
    %v294 = vadd.f32 %v293, 1e-08
    %v295 = vmul.f32 %v292, %v292
    %v296 = vrcp.pop %v294
    %v297 = vmul.f32 %v294, %v296
    %v298 = vsub.f32 1.0, %v297
    %v299 = vmul.f32 %v296, %v298
    %v300 = vadd.f32 %v296, %v299
    %vm301 = vweird.f32 %v294
    %vm302 = vweird.f32 %v296
    %vm303 = vmor %vm301, %vm302
    %v304 = vsel %vm303, %v296, %v300
    %v305 = vand.u32 2147483647, %v294
    %vm306 = vcmp.eq.f32.partialorder %v305, 8.507059e+37
    %v307 = vand.u32 %v294, 2147483648
    %v308 = vor.u32 1.1754944e-38, %v307
    %v309 = vsel %vm306, %v308, %v304
    %v310 = vmul.f32 %v295, %v309
    %v311 = vadd.f32 %v289, %v310
    %v312 = vmul.f32 %v290, %v294
    %v313 = vadd.f32 %v311, 5.5136313
    %v314 = vlog2.pop %v312
    %v315 = vmul.f32 %v314, 0.6931472
    %v316 = vadd.f32 %v313, %v315
    %v317 = vmul.f32 %v316, -0.5
    %v318 = vld [vmem:[#allocation2 + $0x1e] sm:$0x1]
    %v319 = vlog2.pop %v318
    %v320 = vmul.f32 %v319, 0.6931472
    %v321 = vadd.f32 %v317, %v320
    %v322 = vmax.f32 %v248, %v321
    %v323 = vsub.f32 %v100, %v322
    %v324 = vmul.f32 %v323, 1.442695
    %v325 = vpow.pop %v324
    %v326 = vsub.f32 %v173, %v322
    %v327 = vmul.f32 %v326, 1.442695
    %v328 = vpow.pop %v327
    %v329 = vadd.f32 %v325, %v328
    %v330 = vsub.f32 %v247, %v322
    %v331 = vmul.f32 %v330, 1.442695
    %v332 = vpow.pop %v331
    %v333 = vadd.f32 %v329, %v332
    %v334 = vsub.f32 %v321, %v322
    %v335 = vmul.f32 %v334, 1.442695
    %v336 = vpow.pop %v335
    %v337 = vadd.f32 %v333, %v336
    %v338 = vlog2.pop %v337
    %v339 = vmul.f32 %v338, 0.6931472
    %v340 = vadd.f32 %v322, %v339
    %v341 = vlaneseq
    %v342 = vand.u32 %v341, 127
    %s343 = smul.u32 0, 128
    %v344 = vstv %s343
    %v345 = vadd.s32 %v344, %v342
    %vm346 = vcmp.lt.s32.totalorder %v345, 16
    %v347 = vsel %vm346, %v340, 0.0
    %vm348 = vcmask 1040384
    %v349 = vsel %vm348, %v347, 0.0
    %350 = vadd.xlane.f32.xlu0 %v349
    %v351 = vpop.xlane.xlu0 %350
    %v352 = vrot.slane %v351, 4
    %v353 = vadd.f32 %v351, %v352
    %v354 = vrot.slane %v353, 2
    %v355 = vadd.f32 %v353, %v354
    %v356 = vrot.slane %v355, 1
    %v357 = vadd.f32 %v355, %v356
    %s358 = vtos %v357
    %v359 = vstv %s358
    %v360 = vadd.f32 %v359, 0.0
    %361 = vst [vmem:[#allocation5] sm:$0xff] %v360
    // Predicated region
    $region10: #{tpu_custom_call.1} parent=1 // pred_check
      _
    $region11: #{tpu_custom_call.1} parent=1 // pred_check_branch
      %363 = sbr.rel (0) target = $region13
    $region12: #{tpu_custom_call.1} parent=1 // pred_region
      %365 = vsyncadd [#allocation4], 0
      %s367 = sshll.u32 [#allocation5], 4
      %s368 = int_to_ptr.vmem [resolvable:$true] %s367
      %s369 = sshll.u32 %s1, 4
      %s370 = int_to_ptr.hbm [resolvable:$true] %s369
      %372 = dma.vmem_to_hbm [thread:$0]  %s368, 128, %s370, [#allocation4]
    $region13: #{tpu_custom_call.1} parent=1 // pred_fallthru
      _
    // Predicated region
    $region14: #{tpu_custom_call.1} parent=1 // pred_check
      _
    $region15: #{tpu_custom_call.1} parent=1 // pred_check_branch
      %374 = sbr.rel (0) target = $region17
    $region16: #{tpu_custom_call.1} parent=1 // pred_region
      %376 = dma.done [#allocation4], 128
    $region17: #{tpu_custom_call.1} parent=1 // pred_fallthru
      _
    %377 = vsyncpa [#allocation3], 1
    %378 = vsyncpa [#allocation4], 1

</llo_original>
